<compile_context>
chip_gen: v7x
topology: tpu7x:2x2x1
jax: 0.10.0
libtpu: 0.0.40
codegen_flags: <defaults>
</compile_context>

<pallas_src>
import functools

import jax
import jax.numpy as jnp
from jax.experimental import pallas as pl
from jax.experimental.pallas import tpu as pltpu


def _round_up(x, m):
    return -(-x // m) * m


# ----------------------------- Pallas kernel -------------------------------

def _conv_kernel(x_ref, w_ref, b_ref, o_ref, col_ref, *, K, stride, Wph, Lpad, NB):
    """One grid step == NB images.

    x_ref:   (NB, s*s, C, HWpad)  phase-decomposed, row-flattened, lane-padded
    w_ref:   (O, C*K*K)           fused per-tap weights (resident)
    b_ref:   (O, 1)               bias (resident)
    o_ref:   (NB, O, Lpad)        lane-dense output (row pitch Wph, Lpad%128==0)
    col_ref: (C*K*K, NB*Lpad)     VMEM im2col scratch
    """
    s = stride
    C = x_ref.shape[2]

    # im2col build: one (C, Lpad) ref-slice copy per (image, tap).  All indices
    # are static, so each copy is a plain offset VMEM load + store.
    for b in range(NB):
        for kh in range(K):
            ar, pr = kh // s, kh % s
            for kw in range(K):
                ac, pc = kw // s, kw % s
                key = pr * s + pc
                shift = ar * Wph + ac
                t = kh * K + kw
                col_ref[t * C:(t + 1) * C, b * Lpad:(b + 1) * Lpad] = (
                    x_ref[b, key, :, shift:shift + Lpad])

    # Single fused matmul on the MXU (contraction = C*K*K instead of C).
    # TODO(synk): switch the result to a pltpu.VMEM accumulator if O * Lpad
    # grows past the ~64 vreg file (O>=64, large images).
    y = jnp.dot(w_ref[...], col_ref[...], preferred_element_type=jnp.float32)
    y = y + b_ref[...]

    # Per-image lane-aligned, unmasked stores (Lpad is a multiple of 128).
    for b in range(NB):
        o_ref[b, :, :] = y[:, b * Lpad:(b + 1) * Lpad].astype(o_ref.dtype)


# ------------------------------ JAX wrapper ---------------------------------

def reflection_pad_conv2d(x, weight, bias, *, kernel_size, stride):
    """Forward pass of Reflection_Pad_Conv2d.

    x:      (N, C, H, W)   NCHW, like PyTorch
    weight: (O, C, K, K)
    bias:   (O,)
    returns (N, O, OH, OW)
    """
    N, C, H, W = x.shape
    O = weight.shape[0]
    K = kernel_size
    s = stride
    pad = K // 2
    assert pad < H and pad < W, "reflection pad must be smaller than spatial dims"

    # ReflectionPad2d(K // 2).
    # TODO(synk): mirror-index gather has no rectangular BlockSpec form; fuse
    # it into the kernel (static row/col copies) to kill this HBM pre-pass.
    xp = jnp.pad(x, ((0, 0), (0, 0), (pad, pad), (pad, pad)), mode="reflect")
    Hp, Wp = H + 2 * pad, W + 2 * pad
    OH = (Hp - K) // s + 1
    OW = (Wp - K) // s + 1

    # Stride-phase decomposition (identity reshape for stride 1): every conv
    # tap becomes a plain static lane shift of one phase plane in the kernel.
    Hph = -(-Hp // s)
    Wph = -(-Wp // s)
    HWph = Hph * Wph

    # Lane-dense geometry: output computed on a row pitch of Wph; lane extent
    # padded to a multiple of 128 so stores are unmasked; input lane extent
    # zero-padded so every width-Lpad tap slice is in bounds.
    Lacc = (OH - 1) * Wph + OW
    Lpad = _round_up(Lacc, 128)
    max_shift = ((K - 1) // s) * (Wph + 1)
    assert max_shift + Lacc <= HWph, "valid output lanes must read real data"
    HWpad = _round_up(max_shift + Lpad, 128)

    phases = []
    for p in range(s):
        for q in range(s):
            ph = xp[:, :, p::s, q::s]
            if ph.shape[2] != Hph or ph.shape[3] != Wph:
                ph = jnp.pad(ph, ((0, 0), (0, 0),
                                  (0, Hph - ph.shape[2]),
                                  (0, Wph - ph.shape[3])))
            phases.append(ph.reshape(N, C, HWph))
    xph = jnp.stack(phases, axis=1)                              # (N, s*s, C, HWph)
    xph = jnp.pad(xph, ((0, 0), (0, 0), (0, 0), (0, HWpad - HWph)))

    # Fused-tap weight: row order of the im2col slab is (kh*K + kw)*C + c.
    CKK = C * K * K
    w_r = jnp.transpose(weight, (0, 2, 3, 1)).reshape(O, CKK)
    b_r = bias.reshape(O, 1)

    itemsize = jnp.dtype(x.dtype).itemsize

    # Batch-block the grid: each step should present >= ~512 output lanes, but
    # keep the per-step blocks comfortably inside VMEM.
    NB = max(1, min(N, -(-512 // Lpad)))
    while NB > 1 and (NB * (s * s * C * HWpad + O * Lpad)
                      + CKK * NB * Lpad) * itemsize > (8 << 20):
        NB -= 1
    while N % NB:
        NB -= 1
    grid = (N // NB,)

    in_blk = NB * s * s * C * HWpad * itemsize
    out_blk = NB * O * Lpad * itemsize
    col_bytes = CKK * NB * Lpad * itemsize
    vmem_need = 2 * (in_blk + out_blk) + 2 * (w_r.size + b_r.size) * itemsize + col_bytes
    vmem_limit = int(min(max(2 * vmem_need, 8 << 20), 64 << 20))

    kernel = functools.partial(_conv_kernel, K=K, stride=s, Wph=Wph,
                               Lpad=Lpad, NB=NB)

    out_flat = pl.pallas_call(
        kernel,
        out_shape=jax.ShapeDtypeStruct((N, O, Lpad), x.dtype),
        grid_spec=pltpu.PrefetchScalarGridSpec(
            num_scalar_prefetch=0,
            grid=grid,  # NB images per step; batch axis shards across v7x TCs
            in_specs=[
                pl.BlockSpec((NB, s * s, C, HWpad), lambda n: (n, 0, 0, 0)),
                pl.BlockSpec((O, CKK), lambda n: (0, 0)),    # resident weights
                pl.BlockSpec((O, 1), lambda n: (0, 0)),      # resident bias
            ],
            out_specs=pl.BlockSpec((NB, O, Lpad), lambda n: (n, 0, 0)),
            scratch_shapes=[pltpu.VMEM((CKK, NB * Lpad), x.dtype)],
        ),
        compiler_params=pltpu.CompilerParams(
            dimension_semantics=("parallel",),
            vmem_limit_bytes=vmem_limit),
        cost_estimate=pl.CostEstimate(
            flops=2 * N * O * CKK * Lpad,
            transcendentals=0,
            bytes_accessed=(xph.size + w_r.size + b_r.size + N * O * Lpad)
                           * itemsize,
        ),
    )(xph, w_r, b_r)

    # Cheap unpack: crop lane padding, restore pitch-Wph rows, crop columns.
    out = out_flat[:, :, :Lacc]
    out = jnp.pad(out, ((0, 0), (0, 0), (0, OH * Wph - Lacc)))
    out = out.reshape(N, O, OH, Wph)[:, :, :, :OW]
    return out


# ------------------------------- main ---------------------------------------

if __name__ == "__main__":
    in_channels, out_channels, kernel_size = 4, 8, 3

    key = jax.random.PRNGKey(0)
    kx, kw, kb = jax.random.split(key, 3)

    # PyTorch-style uniform(-1/sqrt(fan_in), 1/sqrt(fan_in)) init.
    fan_in = in_channels * kernel_size * kernel_size
    bound = 1.0 / (fan_in ** 0.5)
    weight = jax.random.uniform(
        kw, (out_channels, in_channels, kernel_size, kernel_size),
        minval=-bound, maxval=bound, dtype=jnp.float32)
    bias = jax.random.uniform(
        kb, (out_channels,), minval=-bound, maxval=bound, dtype=jnp.float32)

    x = jax.random.normal(kx, (2, in_channels, 16, 16), dtype=jnp.float32)

    def reference(x, weight, bias, *, kernel_size, stride):
        pad = kernel_size // 2
        xp = jnp.pad(x, ((0, 0), (0, 0), (pad, pad), (pad, pad)), mode="reflect")
        ref = jax.lax.conv_general_dilated(
            xp, weight, window_strides=(stride, stride), padding="VALID",
            dimension_numbers=("NCHW", "OIHW", "NCHW"))
        return ref + bias[None, :, None, None]

    for stride in (1, 2):
        fwd = jax.jit(functools.partial(
            reflection_pad_conv2d, kernel_size=kernel_size, stride=stride))
        out = jax.block_until_ready(fwd(x, weight, bias))
        ref = reference(x, weight, bias, kernel_size=kernel_size, stride=stride)
        assert out.shape == ref.shape, (stride, out.shape, ref.shape)
        assert jnp.allclose(out, ref, atol=1e-4, rtol=1e-4), stride

    print("KERNEL_OK")
</pallas_src>

<mosaic_0001>
module attributes {stable_mosaic.version = 11 : i64} {
  func.func @_conv_kernel(%arg0: i32, %arg1: memref<2x1x4x512xf32, #tpu.memory_space<vmem>>, %arg2: memref<8x36xf32, #tpu.memory_space<vmem>>, %arg3: memref<8x1xf32, #tpu.memory_space<vmem>>, %arg4: memref<2x8x384xf32, #tpu.memory_space<vmem>>, %arg5: memref<36x768xf32, #tpu.memory_space<vmem>>) attributes {dimension_semantics = [#tpu.dimension_semantics<parallel>], iteration_bounds = array<i64: 1>, scalar_prefetch = 0 : i64, scratch_operands = 1 : i64, tpu.core_type = #tpu.core_type<tc>, window_params = [{transform_indices = @transform_0, window_bounds = array<i64: 2, 1, 4, 512>}, {pipeline_mode = #tpu.pipeline_mode<synchronous>, transform_indices = @transform_1, window_bounds = array<i64: 8, 36>}, {pipeline_mode = #tpu.pipeline_mode<synchronous>, transform_indices = @transform_2, window_bounds = array<i64: 8, 1>}, {transform_indices = @transform_3, window_bounds = array<i64: 2, 8, 384>}]} {
    %c0 = arith.constant 0 : index
    %c0_0 = arith.constant 0 : index
    %c0_1 = arith.constant 0 : index
    %c0_2 = arith.constant 0 : index
    %0 = vector.load %arg1[%c0, %c0_0, %c0_1, %c0_2] : memref<2x1x4x512xf32, #tpu.memory_space<vmem>>, vector<1x1x4x384xf32>
    %1 = vector.shape_cast %0 : vector<1x1x4x384xf32> to vector<4x384xf32>
    %c0_3 = arith.constant 0 : index
    %c0_4 = arith.constant 0 : index
    %2 = vector.load %arg5[%c0_3, %c0_4] : memref<36x768xf32, #tpu.memory_space<vmem>>, vector<4x384xf32>
    tpu.vector_store %arg5[%c0_3, %c0_4], %1 {strides = array<i32>} : memref<36x768xf32, #tpu.memory_space<vmem>>, vector<4x384xf32>,
    %c0_5 = arith.constant 0 : index
    %c0_6 = arith.constant 0 : index
    %c0_7 = arith.constant 0 : index
    %c1 = arith.constant 1 : index
    %3 = vector.load %arg1[%c0_5, %c0_6, %c0_7, %c1] : memref<2x1x4x512xf32, #tpu.memory_space<vmem>>, vector<1x1x4x384xf32>
    %4 = vector.shape_cast %3 : vector<1x1x4x384xf32> to vector<4x384xf32>
    %c4 = arith.constant 4 : index
    %c0_8 = arith.constant 0 : index
    %5 = vector.load %arg5[%c4, %c0_8] : memref<36x768xf32, #tpu.memory_space<vmem>>, vector<4x384xf32>
    tpu.vector_store %arg5[%c4, %c0_8], %4 {strides = array<i32>} : memref<36x768xf32, #tpu.memory_space<vmem>>, vector<4x384xf32>,
    %c0_9 = arith.constant 0 : index
    %c0_10 = arith.constant 0 : index
    %c0_11 = arith.constant 0 : index
    %c2 = arith.constant 2 : index
    %6 = vector.load %arg1[%c0_9, %c0_10, %c0_11, %c2] : memref<2x1x4x512xf32, #tpu.memory_space<vmem>>, vector<1x1x4x384xf32>
    %7 = vector.shape_cast %6 : vector<1x1x4x384xf32> to vector<4x384xf32>
    %c8 = arith.constant 8 : index
    %c0_12 = arith.constant 0 : index
    %8 = vector.load %arg5[%c8, %c0_12] : memref<36x768xf32, #tpu.memory_space<vmem>>, vector<4x384xf32>
    tpu.vector_store %arg5[%c8, %c0_12], %7 {strides = array<i32>} : memref<36x768xf32, #tpu.memory_space<vmem>>, vector<4x384xf32>,
    %c0_13 = arith.constant 0 : index
    %c0_14 = arith.constant 0 : index
    %c0_15 = arith.constant 0 : index
    %c18 = arith.constant 18 : index
    %9 = vector.load %arg1[%c0_13, %c0_14, %c0_15, %c18] : memref<2x1x4x512xf32, #tpu.memory_space<vmem>>, vector<1x1x4x384xf32>
    %10 = vector.shape_cast %9 : vector<1x1x4x384xf32> to vector<4x384xf32>
    %c12 = arith.constant 12 : index
    %c0_16 = arith.constant 0 : index
    %11 = vector.load %arg5[%c12, %c0_16] : memref<36x768xf32, #tpu.memory_space<vmem>>, vector<4x384xf32>
    tpu.vector_store %arg5[%c12, %c0_16], %10 {strides = array<i32>} : memref<36x768xf32, #tpu.memory_space<vmem>>, vector<4x384xf32>,
    %c0_17 = arith.constant 0 : index
    %c0_18 = arith.constant 0 : index
    %c0_19 = arith.constant 0 : index
    %c19 = arith.constant 19 : index
    %12 = vector.load %arg1[%c0_17, %c0_18, %c0_19, %c19] : memref<2x1x4x512xf32, #tpu.memory_space<vmem>>, vector<1x1x4x384xf32>
    %13 = vector.shape_cast %12 : vector<1x1x4x384xf32> to vector<4x384xf32>
    %c16 = arith.constant 16 : index
    %c0_20 = arith.constant 0 : index
    %14 = vector.load %arg5[%c16, %c0_20] : memref<36x768xf32, #tpu.memory_space<vmem>>, vector<4x384xf32>
    tpu.vector_store %arg5[%c16, %c0_20], %13 {strides = array<i32>} : memref<36x768xf32, #tpu.memory_space<vmem>>, vector<4x384xf32>,
    %c0_21 = arith.constant 0 : index
    %c0_22 = arith.constant 0 : index
    %c0_23 = arith.constant 0 : index
    %c20 = arith.constant 20 : index
    %15 = vector.load %arg1[%c0_21, %c0_22, %c0_23, %c20] : memref<2x1x4x512xf32, #tpu.memory_space<vmem>>, vector<1x1x4x384xf32>
    %16 = vector.shape_cast %15 : vector<1x1x4x384xf32> to vector<4x384xf32>
    %c20_24 = arith.constant 20 : index
    %c0_25 = arith.constant 0 : index
    %17 = vector.load %arg5[%c20_24, %c0_25] : memref<36x768xf32, #tpu.memory_space<vmem>>, vector<4x384xf32>
    tpu.vector_store %arg5[%c20_24, %c0_25], %16 {strides = array<i32>} : memref<36x768xf32, #tpu.memory_space<vmem>>, vector<4x384xf32>,
    %c0_26 = arith.constant 0 : index
    %c0_27 = arith.constant 0 : index
    %c0_28 = arith.constant 0 : index
    %c36 = arith.constant 36 : index
    %18 = vector.load %arg1[%c0_26, %c0_27, %c0_28, %c36] : memref<2x1x4x512xf32, #tpu.memory_space<vmem>>, vector<1x1x4x384xf32>
    %19 = vector.shape_cast %18 : vector<1x1x4x384xf32> to vector<4x384xf32>
    %c24 = arith.constant 24 : index
    %c0_29 = arith.constant 0 : index
    %20 = vector.load %arg5[%c24, %c0_29] : memref<36x768xf32, #tpu.memory_space<vmem>>, vector<4x384xf32>
    tpu.vector_store %arg5[%c24, %c0_29], %19 {strides = array<i32>} : memref<36x768xf32, #tpu.memory_space<vmem>>, vector<4x384xf32>,
    %c0_30 = arith.constant 0 : index
    %c0_31 = arith.constant 0 : index
    %c0_32 = arith.constant 0 : index
    %c37 = arith.constant 37 : index
    %21 = vector.load %arg1[%c0_30, %c0_31, %c0_32, %c37] : memref<2x1x4x512xf32, #tpu.memory_space<vmem>>, vector<1x1x4x384xf32>
    %22 = vector.shape_cast %21 : vector<1x1x4x384xf32> to vector<4x384xf32>
    %c28 = arith.constant 28 : index
    %c0_33 = arith.constant 0 : index
    %23 = vector.load %arg5[%c28, %c0_33] : memref<36x768xf32, #tpu.memory_space<vmem>>, vector<4x384xf32>
    tpu.vector_store %arg5[%c28, %c0_33], %22 {strides = array<i32>} : memref<36x768xf32, #tpu.memory_space<vmem>>, vector<4x384xf32>,
    %c0_34 = arith.constant 0 : index
    %c0_35 = arith.constant 0 : index
    %c0_36 = arith.constant 0 : index
    %c38 = arith.constant 38 : index
    %24 = vector.load %arg1[%c0_34, %c0_35, %c0_36, %c38] : memref<2x1x4x512xf32, #tpu.memory_space<vmem>>, vector<1x1x4x384xf32>
    %25 = vector.shape_cast %24 : vector<1x1x4x384xf32> to vector<4x384xf32>
    %c32 = arith.constant 32 : index
    %c0_37 = arith.constant 0 : index
    %26 = vector.load %arg5[%c32, %c0_37] : memref<36x768xf32, #tpu.memory_space<vmem>>, vector<4x384xf32>
    tpu.vector_store %arg5[%c32, %c0_37], %25 {strides = array<i32>} : memref<36x768xf32, #tpu.memory_space<vmem>>, vector<4x384xf32>,
    %c1_38 = arith.constant 1 : index
    %c0_39 = arith.constant 0 : index
    %c0_40 = arith.constant 0 : index
    %c0_41 = arith.constant 0 : index
    %27 = vector.load %arg1[%c1_38, %c0_39, %c0_40, %c0_41] : memref<2x1x4x512xf32, #tpu.memory_space<vmem>>, vector<1x1x4x384xf32>
    %28 = vector.shape_cast %27 : vector<1x1x4x384xf32> to vector<4x384xf32>
    %c0_42 = arith.constant 0 : index
    %c384 = arith.constant 384 : index
    %29 = vector.load %arg5[%c0_42, %c384] : memref<36x768xf32, #tpu.memory_space<vmem>>, vector<4x384xf32>
    tpu.vector_store %arg5[%c0_42, %c384], %28 {strides = array<i32>} : memref<36x768xf32, #tpu.memory_space<vmem>>, vector<4x384xf32>,
    %c1_43 = arith.constant 1 : index
    %c0_44 = arith.constant 0 : index
    %c0_45 = arith.constant 0 : index
    %c1_46 = arith.constant 1 : index
    %30 = vector.load %arg1[%c1_43, %c0_44, %c0_45, %c1_46] : memref<2x1x4x512xf32, #tpu.memory_space<vmem>>, vector<1x1x4x384xf32>
    %31 = vector.shape_cast %30 : vector<1x1x4x384xf32> to vector<4x384xf32>
    %c4_47 = arith.constant 4 : index
    %c384_48 = arith.constant 384 : index
    %32 = vector.load %arg5[%c4_47, %c384_48] : memref<36x768xf32, #tpu.memory_space<vmem>>, vector<4x384xf32>
    tpu.vector_store %arg5[%c4_47, %c384_48], %31 {strides = array<i32>} : memref<36x768xf32, #tpu.memory_space<vmem>>, vector<4x384xf32>,
    %c1_49 = arith.constant 1 : index
    %c0_50 = arith.constant 0 : index
    %c0_51 = arith.constant 0 : index
    %c2_52 = arith.constant 2 : index
    %33 = vector.load %arg1[%c1_49, %c0_50, %c0_51, %c2_52] : memref<2x1x4x512xf32, #tpu.memory_space<vmem>>, vector<1x1x4x384xf32>
    %34 = vector.shape_cast %33 : vector<1x1x4x384xf32> to vector<4x384xf32>
    %c8_53 = arith.constant 8 : index
    %c384_54 = arith.constant 384 : index
    %35 = vector.load %arg5[%c8_53, %c384_54] : memref<36x768xf32, #tpu.memory_space<vmem>>, vector<4x384xf32>
    tpu.vector_store %arg5[%c8_53, %c384_54], %34 {strides = array<i32>} : memref<36x768xf32, #tpu.memory_space<vmem>>, vector<4x384xf32>,
    %c1_55 = arith.constant 1 : index
    %c0_56 = arith.constant 0 : index
    %c0_57 = arith.constant 0 : index
    %c18_58 = arith.constant 18 : index
    %36 = vector.load %arg1[%c1_55, %c0_56, %c0_57, %c18_58] : memref<2x1x4x512xf32, #tpu.memory_space<vmem>>, vector<1x1x4x384xf32>
    %37 = vector.shape_cast %36 : vector<1x1x4x384xf32> to vector<4x384xf32>
    %c12_59 = arith.constant 12 : index
    %c384_60 = arith.constant 384 : index
    %38 = vector.load %arg5[%c12_59, %c384_60] : memref<36x768xf32, #tpu.memory_space<vmem>>, vector<4x384xf32>
    tpu.vector_store %arg5[%c12_59, %c384_60], %37 {strides = array<i32>} : memref<36x768xf32, #tpu.memory_space<vmem>>, vector<4x384xf32>,
    %c1_61 = arith.constant 1 : index
    %c0_62 = arith.constant 0 : index
    %c0_63 = arith.constant 0 : index
    %c19_64 = arith.constant 19 : index
    %39 = vector.load %arg1[%c1_61, %c0_62, %c0_63, %c19_64] : memref<2x1x4x512xf32, #tpu.memory_space<vmem>>, vector<1x1x4x384xf32>
    %40 = vector.shape_cast %39 : vector<1x1x4x384xf32> to vector<4x384xf32>
    %c16_65 = arith.constant 16 : index
    %c384_66 = arith.constant 384 : index
    %41 = vector.load %arg5[%c16_65, %c384_66] : memref<36x768xf32, #tpu.memory_space<vmem>>, vector<4x384xf32>
    tpu.vector_store %arg5[%c16_65, %c384_66], %40 {strides = array<i32>} : memref<36x768xf32, #tpu.memory_space<vmem>>, vector<4x384xf32>,
    %c1_67 = arith.constant 1 : index
    %c0_68 = arith.constant 0 : index
    %c0_69 = arith.constant 0 : index
    %c20_70 = arith.constant 20 : index
    %42 = vector.load %arg1[%c1_67, %c0_68, %c0_69, %c20_70] : memref<2x1x4x512xf32, #tpu.memory_space<vmem>>, vector<1x1x4x384xf32>
    %43 = vector.shape_cast %42 : vector<1x1x4x384xf32> to vector<4x384xf32>
    %c20_71 = arith.constant 20 : index
    %c384_72 = arith.constant 384 : index
    %44 = vector.load %arg5[%c20_71, %c384_72] : memref<36x768xf32, #tpu.memory_space<vmem>>, vector<4x384xf32>
    tpu.vector_store %arg5[%c20_71, %c384_72], %43 {strides = array<i32>} : memref<36x768xf32, #tpu.memory_space<vmem>>, vector<4x384xf32>,
    %c1_73 = arith.constant 1 : index
    %c0_74 = arith.constant 0 : index
    %c0_75 = arith.constant 0 : index
    %c36_76 = arith.constant 36 : index
    %45 = vector.load %arg1[%c1_73, %c0_74, %c0_75, %c36_76] : memref<2x1x4x512xf32, #tpu.memory_space<vmem>>, vector<1x1x4x384xf32>
    %46 = vector.shape_cast %45 : vector<1x1x4x384xf32> to vector<4x384xf32>
    %c24_77 = arith.constant 24 : index
    %c384_78 = arith.constant 384 : index
    %47 = vector.load %arg5[%c24_77, %c384_78] : memref<36x768xf32, #tpu.memory_space<vmem>>, vector<4x384xf32>
    tpu.vector_store %arg5[%c24_77, %c384_78], %46 {strides = array<i32>} : memref<36x768xf32, #tpu.memory_space<vmem>>, vector<4x384xf32>,
    %c1_79 = arith.constant 1 : index
    %c0_80 = arith.constant 0 : index
    %c0_81 = arith.constant 0 : index
    %c37_82 = arith.constant 37 : index
    %48 = vector.load %arg1[%c1_79, %c0_80, %c0_81, %c37_82] : memref<2x1x4x512xf32, #tpu.memory_space<vmem>>, vector<1x1x4x384xf32>
    %49 = vector.shape_cast %48 : vector<1x1x4x384xf32> to vector<4x384xf32>
    %c28_83 = arith.constant 28 : index
    %c384_84 = arith.constant 384 : index
    %50 = vector.load %arg5[%c28_83, %c384_84] : memref<36x768xf32, #tpu.memory_space<vmem>>, vector<4x384xf32>
    tpu.vector_store %arg5[%c28_83, %c384_84], %49 {strides = array<i32>} : memref<36x768xf32, #tpu.memory_space<vmem>>, vector<4x384xf32>,
    %c1_85 = arith.constant 1 : index
    %c0_86 = arith.constant 0 : index
    %c0_87 = arith.constant 0 : index
    %c38_88 = arith.constant 38 : index
    %51 = vector.load %arg1[%c1_85, %c0_86, %c0_87, %c38_88] : memref<2x1x4x512xf32, #tpu.memory_space<vmem>>, vector<1x1x4x384xf32>
    %52 = vector.shape_cast %51 : vector<1x1x4x384xf32> to vector<4x384xf32>
    %c32_89 = arith.constant 32 : index
    %c384_90 = arith.constant 384 : index
    %53 = vector.load %arg5[%c32_89, %c384_90] : memref<36x768xf32, #tpu.memory_space<vmem>>, vector<4x384xf32>
    tpu.vector_store %arg5[%c32_89, %c384_90], %52 {strides = array<i32>} : memref<36x768xf32, #tpu.memory_space<vmem>>, vector<4x384xf32>,
    %c0_91 = arith.constant 0 : index
    %c0_92 = arith.constant 0 : index
    %54 = vector.load %arg2[%c0_91, %c0_92] : memref<8x36xf32, #tpu.memory_space<vmem>>, vector<8x36xf32>
    %c0_93 = arith.constant 0 : index
    %c0_94 = arith.constant 0 : index
    %55 = vector.load %arg5[%c0_93, %c0_94] : memref<36x768xf32, #tpu.memory_space<vmem>>, vector<36x768xf32>
    %cst = arith.constant dense<0.000000e+00> : vector<8x768xf32>
    %56 = tpu.matmul %54, %55, %cst {dimension_numbers = #tpu.dot_dimension_numbers<[1], [0], [0], [1], [0, 0, 1, 1], [], []>} : vector<8x36xf32>, vector<36x768xf32>, vector<8x768xf32> -> vector<8x768xf32>
    %c0_95 = arith.constant 0 : index
    %c0_96 = arith.constant 0 : index
    %57 = vector.load %arg3[%c0_95, %c0_96] : memref<8x1xf32, #tpu.memory_space<vmem>>, vector<8x1xf32>
    %58 = vector.broadcast %57 : vector<8x1xf32> to vector<8x768xf32>
    %59 = arith.addf %56, %58 : vector<8x768xf32>
    %60 = vector.extract_strided_slice %59 {offsets = [0, 0], sizes = [8, 384], strides = [1, 1]} : vector<8x768xf32> to vector<8x384xf32>
    %c0_97 = arith.constant 0 : index
    %c0_98 = arith.constant 0 : index
    %c0_99 = arith.constant 0 : index
    %61 = vector.load %arg4[%c0_97, %c0_98, %c0_99] : memref<2x8x384xf32, #tpu.memory_space<vmem>>, vector<1x8x384xf32>
    %62 = vector.shape_cast %61 : vector<1x8x384xf32> to vector<8x384xf32>
    %63 = vector.shape_cast %60 : vector<8x384xf32> to vector<1x8x384xf32>
    tpu.vector_store %arg4[%c0_97, %c0_98, %c0_99], %63 {strides = array<i32>} : memref<2x8x384xf32, #tpu.memory_space<vmem>>, vector<1x8x384xf32>,
    %64 = vector.extract_strided_slice %59 {offsets = [0, 384], sizes = [8, 384], strides = [1, 1]} : vector<8x768xf32> to vector<8x384xf32>
    %c1_100 = arith.constant 1 : index
    %c0_101 = arith.constant 0 : index
    %c0_102 = arith.constant 0 : index
    %65 = vector.load %arg4[%c1_100, %c0_101, %c0_102] : memref<2x8x384xf32, #tpu.memory_space<vmem>>, vector<1x8x384xf32>
    %66 = vector.shape_cast %65 : vector<1x8x384xf32> to vector<8x384xf32>
    %67 = vector.shape_cast %64 : vector<8x384xf32> to vector<1x8x384xf32>
    tpu.vector_store %arg4[%c1_100, %c0_101, %c0_102], %67 {strides = array<i32>} : memref<2x8x384xf32, #tpu.memory_space<vmem>>, vector<1x8x384xf32>,
    return
  }
  func.func @transform_0(%arg0: i32) -> (i32, i32, i32, i32) {
    %c0_i32 = arith.constant 0 : i32
    %c0_i32_0 = arith.constant 0 : i32
    %c0_i32_1 = arith.constant 0 : i32
    %c0_i32_2 = arith.constant 0 : i32
    return %arg0, %c0_i32, %c0_i32_0, %c0_i32_1 : i32, i32, i32, i32
  }
  func.func @transform_1(%arg0: i32) -> (i32, i32) {
    %c0_i32 = arith.constant 0 : i32
    %c0_i32_0 = arith.constant 0 : i32
    %c0_i32_1 = arith.constant 0 : i32
    return %c0_i32, %c0_i32_0 : i32, i32
  }
  func.func @transform_2(%arg0: i32) -> (i32, i32) {
    %c0_i32 = arith.constant 0 : i32
    %c0_i32_0 = arith.constant 0 : i32
    %c0_i32_1 = arith.constant 0 : i32
    return %c0_i32, %c0_i32_0 : i32, i32
  }
  func.func @transform_3(%arg0: i32) -> (i32, i32, i32) {
    %c0_i32 = arith.constant 0 : i32
    %c0_i32_0 = arith.constant 0 : i32
    %c0_i32_1 = arith.constant 0 : i32
    return %arg0, %c0_i32, %c0_i32_0 : i32, i32, i32
  }
}

</mosaic_0001>

<llo_original>
// kernel: reflection_pad_conv2d.1
$region0: #{reflection_pad_conv2d.1}
  #allocation0 [shape = 'u32[]', space=smem, size = 0x4, offset = 0x4, fixed_abs, tag = 'smem constant byte address 0x4 - core index']
  #allocation1 [shape = 'u32[144,128]{1,0:T(1,128)}', space=vmem, size = 0x12000, scoped, tag = 'internal scratch']
  #allocation2 [shape = 'f32[36,768]{1,0:T(8,128)}', space=vmem, size = 0x1e000, scoped, tag = 'scratch operand']
  %s0 = inlined_call_operand.vmem [shape: f32[2,1,4,512], index: 0, kind: input, shape index: {}]
  %s1 = inlined_call_operand.vmem [shape: f32[8,36], index: 1, kind: input, shape index: {}]
  %s2 = inlined_call_operand.vmem [shape: f32[8,1], index: 2, kind: input, shape index: {}]
  %s3 = inlined_call_operand.vmem [shape: f32[2,8,384], index: 3, kind: output, shape index: {}]
  %s4 = sld [smem:[#allocation0]]
  $region22: #{reflection_pad_conv2d.1} parent=0
    _
  %s6 = ssub.s32 1, %s4
  %s7 = scalar_select 0, %s6, %s4
  // Predicated region
  $region2: #{reflection_pad_conv2d.1} parent=0 // pred_check
    _
  $region3: #{reflection_pad_conv2d.1} parent=0 // pred_check_branch
    %9 = sbr.rel (0) target = $region5
  $region4: #{reflection_pad_conv2d.1} parent=0 // pred_region
    _
  $region5: #{reflection_pad_conv2d.1} parent=0 // pred_fallthru
    _
  // Predicated region
  $region6: #{reflection_pad_conv2d.1} parent=0 // pred_check
    _
  $region7: #{reflection_pad_conv2d.1} parent=0 // pred_check_branch
    %11 = sbr.rel (0) target = $region9
  $region8: #{reflection_pad_conv2d.1} parent=0 // pred_region
    _
  $region9: #{reflection_pad_conv2d.1} parent=0 // pred_fallthru
    _
  // Predicated region
  $region10: #{reflection_pad_conv2d.1} parent=0 // pred_check
    _
  $region11: #{reflection_pad_conv2d.1} parent=0 // pred_check_branch
    %13 = sbr.rel (0) target = $region13
  $region12: #{reflection_pad_conv2d.1} parent=0 // pred_region
    _
  $region13: #{reflection_pad_conv2d.1} parent=0 // pred_fallthru
    _
  %v14 = vld [vmem:[%s0] sm:$0xff]
  %v15 = vld [vmem:[%s0 + $0x8] sm:$0xf]
  %v17 = vcombine.high %v14, %v14
  %19 = vst [vmem:[#allocation2] sm:$0xf] %v14
  %20 = vst [vmem:[#allocation2 + $0x8] sm:$0xf] %v17
  %21 = vst [vmem:[#allocation2 + $0x10] sm:$0xf] %v15
  %v22 = vld [vmem:[%s0] sm:$0xff]
  %v23 = vld [vmem:[%s0 + $0x8] sm:$0xff]
  %v26 = vcombine.low %v22, %v22
  %v27 = vcombine.low %v23, %v23
  %28 = vrot.lane.b32.xlu0 %v26, 127
  %v29 = vpop.permute.xlu0 %28
  %30 = vrot.lane.b32.xlu0 %v22, 127
  %v31 = vpop.permute.xlu0 %30
  %32 = vrot.lane.b32.xlu0 %v27, 127
  %v33 = vpop.permute.xlu0 %32
  %34 = vrot.lane.b32.xlu0 %v23, 127
  %v35 = vpop.permute.xlu0 %34
  %vm36 = vcmask 1039360
  %v37 = vsel %vm36, %v29, %v31
  %v38 = vsel %vm36, %v31, %v33
  %v39 = vsel %vm36, %v33, %v35
  %43 = vst [vmem:[#allocation2] sm:$0xf0] %v37
  %44 = vst [vmem:[#allocation2 + $0x8] sm:$0xf0] %v38
  %45 = vst [vmem:[#allocation2 + $0x10] sm:$0xf0] %v39
  %v46 = vld [vmem:[%s0] sm:$0xff]
  %v47 = vld [vmem:[%s0 + $0x8] sm:$0xff]
  %v50 = vcombine.high %v46, %v46
  %v51 = vcombine.high %v47, %v47
  %52 = vrot.lane.b32.xlu0 %v46, 126
  %v53 = vpop.permute.xlu0 %52
  %54 = vrot.lane.b32.xlu0 %v50, 126
  %v55 = vpop.permute.xlu0 %54
  %56 = vrot.lane.b32.xlu0 %v47, 126
  %v57 = vpop.permute.xlu0 %56
  %58 = vrot.lane.b32.xlu0 %v51, 126
  %v59 = vpop.permute.xlu0 %58
  %vm60 = vcmask 1031168
  %v61 = vsel %vm60, %v53, %v55
  %v62 = vsel %vm60, %v55, %v57
  %v63 = vsel %vm60, %v57, %v59
  %67 = vst [vmem:[#allocation2 + $0x30] sm:$0xf] %v61
  %68 = vst [vmem:[#allocation2 + $0x38] sm:$0xf] %v62
  %69 = vst [vmem:[#allocation2 + $0x40] sm:$0xf] %v63
  %v70 = vld [vmem:[%s0] sm:$0xff]
  %v71 = vld [vmem:[%s0 + $0x8] sm:$0xff]
  %v74 = vcombine.low %v70, %v70
  %v75 = vcombine.low %v71, %v71
  %76 = vrot.lane.b32.xlu0 %v74, 110
  %v77 = vpop.permute.xlu0 %76
  %78 = vrot.lane.b32.xlu0 %v70, 110
  %v79 = vpop.permute.xlu0 %78
  %80 = vrot.lane.b32.xlu0 %v75, 110
  %v81 = vpop.permute.xlu0 %80
  %82 = vrot.lane.b32.xlu0 %v71, 110
  %v83 = vpop.permute.xlu0 %82
  %vm84 = vcmask 900096
  %v85 = vsel %vm84, %v77, %v79
  %v86 = vsel %vm84, %v79, %v81
  %v87 = vsel %vm84, %v81, %v83
  %91 = vst [vmem:[#allocation2 + $0x30] sm:$0xf0] %v85
  %92 = vst [vmem:[#allocation2 + $0x38] sm:$0xf0] %v86
  %93 = vst [vmem:[#allocation2 + $0x40] sm:$0xf0] %v87
  %v94 = vld [vmem:[%s0] sm:$0xff]
  %v95 = vld [vmem:[%s0 + $0x8] sm:$0xff]
  %v98 = vcombine.high %v94, %v94
  %v99 = vcombine.high %v95, %v95
  %100 = vrot.lane.b32.xlu0 %v94, 109
  %v101 = vpop.permute.xlu0 %100
  %102 = vrot.lane.b32.xlu0 %v98, 109
  %v103 = vpop.permute.xlu0 %102
  %104 = vrot.lane.b32.xlu0 %v95, 109
  %v105 = vpop.permute.xlu0 %104
  %106 = vrot.lane.b32.xlu0 %v99, 109
  %v107 = vpop.permute.xlu0 %106
  %vm108 = vcmask 891904
  %v109 = vsel %vm108, %v101, %v103
  %v110 = vsel %vm108, %v103, %v105
  %v111 = vsel %vm108, %v105, %v107
  %115 = vst [vmem:[#allocation2 + $0x60] sm:$0xf] %v109
  %116 = vst [vmem:[#allocation2 + $0x68] sm:$0xf] %v110
  %117 = vst [vmem:[#allocation2 + $0x70] sm:$0xf] %v111
  %v118 = vld [vmem:[%s0] sm:$0xff]
  %v119 = vld [vmem:[%s0 + $0x8] sm:$0xff]
  %v122 = vcombine.low %v118, %v118
  %v123 = vcombine.low %v119, %v119
  %124 = vrot.lane.b32.xlu0 %v122, 108
  %v125 = vpop.permute.xlu0 %124
  %126 = vrot.lane.b32.xlu0 %v118, 108
  %v127 = vpop.permute.xlu0 %126
  %128 = vrot.lane.b32.xlu0 %v123, 108
  %v129 = vpop.permute.xlu0 %128
  %130 = vrot.lane.b32.xlu0 %v119, 108
  %v131 = vpop.permute.xlu0 %130
  %vm132 = vcmask 883712
  %v133 = vsel %vm132, %v125, %v127
  %v134 = vsel %vm132, %v127, %v129
  %v135 = vsel %vm132, %v129, %v131
  %139 = vst [vmem:[#allocation2 + $0x60] sm:$0xf0] %v133
  %140 = vst [vmem:[#allocation2 + $0x68] sm:$0xf0] %v134
  %141 = vst [vmem:[#allocation2 + $0x70] sm:$0xf0] %v135
  %v142 = vld [vmem:[%s0] sm:$0xff]
  %v143 = vld [vmem:[%s0 + $0x8] sm:$0xff]
  %v146 = vcombine.high %v142, %v142
  %v147 = vcombine.high %v143, %v143
  %148 = vrot.lane.b32.xlu0 %v142, 92
  %v149 = vpop.permute.xlu0 %148
  %150 = vrot.lane.b32.xlu0 %v146, 92
  %v151 = vpop.permute.xlu0 %150
  %152 = vrot.lane.b32.xlu0 %v143, 92
  %v153 = vpop.permute.xlu0 %152
  %154 = vrot.lane.b32.xlu0 %v147, 92
  %v155 = vpop.permute.xlu0 %154
  %vm156 = vcmask 752640
  %v157 = vsel %vm156, %v149, %v151
  %v158 = vsel %vm156, %v151, %v153
  %v159 = vsel %vm156, %v153, %v155
  %163 = vst [vmem:[#allocation2 + $0x90] sm:$0xf] %v157
  %164 = vst [vmem:[#allocation2 + $0x98] sm:$0xf] %v158
  %165 = vst [vmem:[#allocation2 + $0xa0] sm:$0xf] %v159
  %v166 = vld [vmem:[%s0] sm:$0xff]
  %v167 = vld [vmem:[%s0 + $0x8] sm:$0xff]
  %v170 = vcombine.low %v166, %v166
  %v171 = vcombine.low %v167, %v167
  %172 = vrot.lane.b32.xlu0 %v170, 91
  %v173 = vpop.permute.xlu0 %172
  %174 = vrot.lane.b32.xlu0 %v166, 91
  %v175 = vpop.permute.xlu0 %174
  %176 = vrot.lane.b32.xlu0 %v171, 91
  %v177 = vpop.permute.xlu0 %176
  %178 = vrot.lane.b32.xlu0 %v167, 91
  %v179 = vpop.permute.xlu0 %178
  %vm180 = vcmask 744448
  %v181 = vsel %vm180, %v173, %v175
  %v182 = vsel %vm180, %v175, %v177
  %v183 = vsel %vm180, %v177, %v179
  %187 = vst [vmem:[#allocation2 + $0x90] sm:$0xf0] %v181
  %188 = vst [vmem:[#allocation2 + $0x98] sm:$0xf0] %v182
  %189 = vst [vmem:[#allocation2 + $0xa0] sm:$0xf0] %v183
  %v190 = vld [vmem:[%s0] sm:$0xff]
  %v191 = vld [vmem:[%s0 + $0x8] sm:$0xff]
  %v194 = vcombine.high %v190, %v190
  %v195 = vcombine.high %v191, %v191
  %196 = vrot.lane.b32.xlu0 %v190, 90
  %v197 = vpop.permute.xlu0 %196
  %198 = vrot.lane.b32.xlu0 %v194, 90
  %v199 = vpop.permute.xlu0 %198
  %200 = vrot.lane.b32.xlu0 %v191, 90
  %v201 = vpop.permute.xlu0 %200
  %202 = vrot.lane.b32.xlu0 %v195, 90
  %v203 = vpop.permute.xlu0 %202
  %vm204 = vcmask 736256
  %v205 = vsel %vm204, %v197, %v199
  %v206 = vsel %vm204, %v199, %v201
  %v207 = vsel %vm204, %v201, %v203
  %211 = vst [vmem:[#allocation2 + $0xc0] sm:$0xf] %v205
  %212 = vst [vmem:[#allocation2 + $0xc8] sm:$0xf] %v206
  %213 = vst [vmem:[#allocation2 + $0xd0] sm:$0xf] %v207
  %s214 = scalar_lea.vmem %s0, 16
  %v215 = vld [vmem:[%s214] sm:$0xff]
  %v216 = vld [vmem:[%s214 + $0x8] sm:$0xf]
  %v218 = vcombine.high %v215, %v215
  %220 = vst [vmem:[#allocation2 + $0x18] sm:$0xf] %v215
  %221 = vst [vmem:[#allocation2 + $0x20] sm:$0xf] %v218
  %222 = vst [vmem:[#allocation2 + $0x28] sm:$0xf] %v216
  %v223 = vld [vmem:[%s214] sm:$0xff]
  %v224 = vld [vmem:[%s214 + $0x8] sm:$0xff]
  %v227 = vcombine.low %v223, %v223
  %v228 = vcombine.low %v224, %v224
  %229 = vrot.lane.b32.xlu0 %v227, 127
  %v230 = vpop.permute.xlu0 %229
  %231 = vrot.lane.b32.xlu0 %v223, 127
  %v232 = vpop.permute.xlu0 %231
  %233 = vrot.lane.b32.xlu0 %v228, 127
  %v234 = vpop.permute.xlu0 %233
  %235 = vrot.lane.b32.xlu0 %v224, 127
  %v236 = vpop.permute.xlu0 %235
  %v237 = vsel %vm36, %v230, %v232
  %v238 = vsel %vm36, %v232, %v234
  %v239 = vsel %vm36, %v234, %v236
  %243 = vst [vmem:[#allocation2 + $0x18] sm:$0xf0] %v237
  %244 = vst [vmem:[#allocation2 + $0x20] sm:$0xf0] %v238
  %245 = vst [vmem:[#allocation2 + $0x28] sm:$0xf0] %v239
  %v246 = vld [vmem:[%s214] sm:$0xff]
  %v247 = vld [vmem:[%s214 + $0x8] sm:$0xff]
  %v250 = vcombine.high %v246, %v246
  %v251 = vcombine.high %v247, %v247
  %252 = vrot.lane.b32.xlu0 %v246, 126
  %v253 = vpop.permute.xlu0 %252
  %254 = vrot.lane.b32.xlu0 %v250, 126
  %v255 = vpop.permute.xlu0 %254
  %256 = vrot.lane.b32.xlu0 %v247, 126
  %v257 = vpop.permute.xlu0 %256
  %258 = vrot.lane.b32.xlu0 %v251, 126
  %v259 = vpop.permute.xlu0 %258
  %v260 = vsel %vm60, %v253, %v255
  %v261 = vsel %vm60, %v255, %v257
  %v262 = vsel %vm60, %v257, %v259
  %266 = vst [vmem:[#allocation2 + $0x48] sm:$0xf] %v260
  %267 = vst [vmem:[#allocation2 + $0x50] sm:$0xf] %v261
  %268 = vst [vmem:[#allocation2 + $0x58] sm:$0xf] %v262
  %v269 = vld [vmem:[%s214] sm:$0xff]
  %v270 = vld [vmem:[%s214 + $0x8] sm:$0xff]
  %v273 = vcombine.low %v269, %v269
  %v274 = vcombine.low %v270, %v270
  %275 = vrot.lane.b32.xlu0 %v273, 110
  %v276 = vpop.permute.xlu0 %275
  %277 = vrot.lane.b32.xlu0 %v269, 110
  %v278 = vpop.permute.xlu0 %277
  %279 = vrot.lane.b32.xlu0 %v274, 110
  %v280 = vpop.permute.xlu0 %279
  %281 = vrot.lane.b32.xlu0 %v270, 110
  %v282 = vpop.permute.xlu0 %281
  %v283 = vsel %vm84, %v276, %v278
  %v284 = vsel %vm84, %v278, %v280
  %v285 = vsel %vm84, %v280, %v282
  %289 = vst [vmem:[#allocation2 + $0x48] sm:$0xf0] %v283
  %290 = vst [vmem:[#allocation2 + $0x50] sm:$0xf0] %v284
  %291 = vst [vmem:[#allocation2 + $0x58] sm:$0xf0] %v285
  %v292 = vld [vmem:[%s214] sm:$0xff]
  %v293 = vld [vmem:[%s214 + $0x8] sm:$0xff]
  %v296 = vcombine.high %v292, %v292
  %v297 = vcombine.high %v293, %v293
  %298 = vrot.lane.b32.xlu0 %v292, 109
  %v299 = vpop.permute.xlu0 %298
  %300 = vrot.lane.b32.xlu0 %v296, 109
  %v301 = vpop.permute.xlu0 %300
  %302 = vrot.lane.b32.xlu0 %v293, 109
  %v303 = vpop.permute.xlu0 %302
  %304 = vrot.lane.b32.xlu0 %v297, 109
  %v305 = vpop.permute.xlu0 %304
  %v306 = vsel %vm108, %v299, %v301
  %v307 = vsel %vm108, %v301, %v303
  %v308 = vsel %vm108, %v303, %v305
  %312 = vst [vmem:[#allocation2 + $0x78] sm:$0xf] %v306
  %313 = vst [vmem:[#allocation2 + $0x80] sm:$0xf] %v307
  %314 = vst [vmem:[#allocation2 + $0x88] sm:$0xf] %v308
  %v315 = vld [vmem:[%s214] sm:$0xff]
  %v316 = vld [vmem:[%s214 + $0x8] sm:$0xff]
  %v319 = vcombine.low %v315, %v315
  %v320 = vcombine.low %v316, %v316
  %321 = vrot.lane.b32.xlu0 %v319, 108
  %v322 = vpop.permute.xlu0 %321
  %323 = vrot.lane.b32.xlu0 %v315, 108
  %v324 = vpop.permute.xlu0 %323
  %325 = vrot.lane.b32.xlu0 %v320, 108
  %v326 = vpop.permute.xlu0 %325
  %327 = vrot.lane.b32.xlu0 %v316, 108
  %v328 = vpop.permute.xlu0 %327
  %v329 = vsel %vm132, %v322, %v324
  %v330 = vsel %vm132, %v324, %v326
  %v331 = vsel %vm132, %v326, %v328
  %335 = vst [vmem:[#allocation2 + $0x78] sm:$0xf0] %v329
  %336 = vst [vmem:[#allocation2 + $0x80] sm:$0xf0] %v330
  %337 = vst [vmem:[#allocation2 + $0x88] sm:$0xf0] %v331
  %v338 = vld [vmem:[%s214] sm:$0xff]
  %v339 = vld [vmem:[%s214 + $0x8] sm:$0xff]
  %v342 = vcombine.high %v338, %v338
  %v343 = vcombine.high %v339, %v339
  %344 = vrot.lane.b32.xlu0 %v338, 92
  %v345 = vpop.permute.xlu0 %344
  %346 = vrot.lane.b32.xlu0 %v342, 92
  %v347 = vpop.permute.xlu0 %346
  %348 = vrot.lane.b32.xlu0 %v339, 92
  %v349 = vpop.permute.xlu0 %348
  %350 = vrot.lane.b32.xlu0 %v343, 92
  %v351 = vpop.permute.xlu0 %350
  %v352 = vsel %vm156, %v345, %v347
  %v353 = vsel %vm156, %v347, %v349
  %v354 = vsel %vm156, %v349, %v351
  %358 = vst [vmem:[#allocation2 + $0xa8] sm:$0xf] %v352
  %359 = vst [vmem:[#allocation2 + $0xb0] sm:$0xf] %v353
  %360 = vst [vmem:[#allocation2 + $0xb8] sm:$0xf] %v354
  %v361 = vld [vmem:[%s214] sm:$0xff]
  %v362 = vld [vmem:[%s214 + $0x8] sm:$0xff]
  %v365 = vcombine.low %v361, %v361
  %v366 = vcombine.low %v362, %v362
  %367 = vrot.lane.b32.xlu0 %v365, 91
  %v368 = vpop.permute.xlu0 %367
  %369 = vrot.lane.b32.xlu0 %v361, 91
  %v370 = vpop.permute.xlu0 %369
  %371 = vrot.lane.b32.xlu0 %v366, 91
  %v372 = vpop.permute.xlu0 %371
  %373 = vrot.lane.b32.xlu0 %v362, 91
  %v374 = vpop.permute.xlu0 %373
  %v375 = vsel %vm180, %v368, %v370
  %v376 = vsel %vm180, %v370, %v372
  %v377 = vsel %vm180, %v372, %v374
  %381 = vst [vmem:[#allocation2 + $0xa8] sm:$0xf0] %v375
  %382 = vst [vmem:[#allocation2 + $0xb0] sm:$0xf0] %v376
  %383 = vst [vmem:[#allocation2 + $0xb8] sm:$0xf0] %v377
  %v384 = vld [vmem:[%s214] sm:$0xff]
  %v385 = vld [vmem:[%s214 + $0x8] sm:$0xff]
  %v388 = vcombine.high %v384, %v384
  %v389 = vcombine.high %v385, %v385
  %390 = vrot.lane.b32.xlu0 %v384, 90
  %v391 = vpop.permute.xlu0 %390
  %392 = vrot.lane.b32.xlu0 %v388, 90
  %v393 = vpop.permute.xlu0 %392
  %394 = vrot.lane.b32.xlu0 %v385, 90
  %v395 = vpop.permute.xlu0 %394
  %396 = vrot.lane.b32.xlu0 %v389, 90
  %v397 = vpop.permute.xlu0 %396
  %v398 = vsel %vm204, %v391, %v393
  %v399 = vsel %vm204, %v393, %v395
  %v400 = vsel %vm204, %v395, %v397
  %404 = vst [vmem:[#allocation2 + $0xd8] sm:$0xf] %v398
  %405 = vst [vmem:[#allocation2 + $0xe0] sm:$0xf] %v399
  %406 = vst [vmem:[#allocation2 + $0xe8] sm:$0xf] %v400
  %v407 = vld [vmem:[%s1] sm:$0xff]
  %v408 = vld [vmem:[#allocation2] sm:$0xff]
  %v409 = vld [vmem:[#allocation2 + $0x8] sm:$0xff]
  %v410 = vld [vmem:[#allocation2 + $0x10] sm:$0xff]
  %v411 = vld [vmem:[#allocation2 + $0x18] sm:$0xff]
  %v412 = vld [vmem:[#allocation2 + $0x20] sm:$0xff]
  %v413 = vld [vmem:[#allocation2 + $0x28] sm:$0xff]
  %v414 = vld [vmem:[#allocation2 + $0x30] sm:$0xff]
  %v415 = vld [vmem:[#allocation2 + $0x38] sm:$0xff]
  %v416 = vld [vmem:[#allocation2 + $0x40] sm:$0xff]
  %v417 = vld [vmem:[#allocation2 + $0x48] sm:$0xff]
  %v418 = vld [vmem:[#allocation2 + $0x50] sm:$0xff]
  %v419 = vld [vmem:[#allocation2 + $0x58] sm:$0xff]
  %v420 = vld [vmem:[#allocation2 + $0x60] sm:$0xff]
  %v421 = vld [vmem:[#allocation2 + $0x68] sm:$0xff]
  %v422 = vld [vmem:[#allocation2 + $0x70] sm:$0xff]
  %v423 = vld [vmem:[#allocation2 + $0x78] sm:$0xff]
  %v424 = vld [vmem:[#allocation2 + $0x80] sm:$0xff]
  %v425 = vld [vmem:[#allocation2 + $0x88] sm:$0xff]
  %v426 = vld [vmem:[#allocation2 + $0x90] sm:$0xff]
  %v427 = vld [vmem:[#allocation2 + $0x98] sm:$0xff]
  %v428 = vld [vmem:[#allocation2 + $0xa0] sm:$0xff]
  %v429 = vld [vmem:[#allocation2 + $0xa8] sm:$0xff]
  %v430 = vld [vmem:[#allocation2 + $0xb0] sm:$0xff]
  %v431 = vld [vmem:[#allocation2 + $0xb8] sm:$0xff]
  %v432 = vld [vmem:[#allocation2 + $0xc0] sm:$0xf]
  %v433 = vld [vmem:[#allocation2 + $0xc8] sm:$0xf]
  %v434 = vld [vmem:[#allocation2 + $0xd0] sm:$0xf]
  %v435 = vld [vmem:[#allocation2 + $0xd8] sm:$0xf]
  %v436 = vld [vmem:[#allocation2 + $0xe0] sm:$0xf]
  %v437 = vld [vmem:[#allocation2 + $0xe8] sm:$0xf]
  %v438 = vld [vmem:[%s2] sm:$0xff]
  %440 = vset.pattern.permute.xlu0 0
  %441 = vperm.xlu0 %440, %v438
  %v442 = vpop.permute.xlu0 %441
  %vm444 = vcmask 293888
  %v446 = vsel %vm444, %v407, 0
  %vm448 = vcmask 1043456
  %v450 = vsel %vm448, %v432, 0
  %v453 = vsel %vm448, %v433, 0
  %v456 = vsel %vm448, %v434, 0
  %v459 = vsel %vm448, %v435, 0
  %v462 = vsel %vm448, %v436, 0
  %v465 = vsel %vm448, %v437, 0
  %467 = vmatprep.subr.mxu0 %v409
  %468 = vmatpush1.msra.mxu0 %v408
  %469 = vmatprep.subr.mxu0 %v415
  %470 = vmatpush1.msra.mxu0 %v414
  %471 = vmatprep.subr.mxu0 %v421
  %472 = vmatpush1.msra.mxu0 %v420
  %473 = vmatprep.subr.mxu0 %v427
  %474 = vmatpush1.msra.mxu0 %v426
  %475 = vmatprep.subr.mxu0 %v453
  %476 = vmatpush1.msra.mxu0 %v450
  %477 = vmatprep.subr.mxu0 0.0
  %478 = vmatpush1.msra.mxu0 0.0
  %479 = vmatprep.subr.mxu0 0.0
  %480 = vmatpush1.msra.mxu0 0.0
  %481 = vmatprep.subr.mxu0 0.0
  %482 = vmatpush1.msra.mxu0 0.0
  %483 = vmatprep.subr.mxu0 0.0
  %484 = vmatpush1.msra.mxu0 0.0
  %485 = vmatprep.subr.mxu0 0.0
  %486 = vmatpush1.msra.mxu0 0.0
  %487 = vmatprep.subr.mxu0 0.0
  %488 = vmatpush1.msra.mxu0 0.0
  %489 = vmatprep.subr.mxu0 0.0
  %490 = vmatpush1.msra.mxu0 0.0
  %491 = vmatprep.subr.mxu0 0.0
  %492 = vmatpush1.msra.mxu0 0.0
  %493 = vmatprep.subr.mxu0 0.0
  %494 = vmatpush1.msra.mxu0 0.0
  %495 = vmatprep.subr.mxu0 0.0
  %496 = vmatpush1.msra.mxu0 0.0
  %497 = vmatprep.subr.mxu0 0.0
  %498 = vmatpush1.msra.mxu0 0.0
  %499 = vmatprep.subr.mxu0 0.0
  %500 = vmatpush1.msra.mxu0 0.0
  %501 = vmatprep.subr.mxu0 0.0
  %502 = vmatpush1.msra.mxu0 0.0
  %503 = vmatprep.subr.mxu0 0.0
  %504 = vmatpush1.msra.mxu0 0.0
  %505 = vmatprep.subr.mxu0 0.0
  %506 = vmatpush1.msra.mxu0 0.0
  %507 = vmatprep.subr.mxu0 0.0
  %508 = vmatpush1.msra.mxu0 0.0
  %509 = vmatprep.subr.mxu0 0.0
  %510 = vmatpush1.msra.mxu0 0.0
  %511 = vmatprep.subr.mxu0 0.0
  %512 = vmatpush1.msra.mxu0 0.0
  %513 = vmatprep.subr.mxu0 0.0
  %514 = vmatpush1.msra.mxu0 0.0
  %515 = vmatprep.subr.mxu0 0.0
  %516 = vmatpush1.msra.mxu0 0.0
  %517 = vmatprep.subr.mxu0 0.0
  %518 = vmatpush1.msra.mxu0 0.0
  %519 = vmatprep.subr.mxu0 0.0
  %520 = vmatpush1.msra.mxu0 0.0
  %521 = vmatprep.subr.mxu0 0.0
  %522 = vmatpush1.msra.mxu0 0.0
  %523 = vmatprep.subr.mxu0 0.0
  %524 = vmatpush1.msra.mxu0 0.0
  %525 = vmatprep.subr.mxu0 0.0
  %526 = vmatpush1.msra.mxu0 0.0
  %527 = vmatprep.subr.mxu0 0.0
  %528 = vmatpush1.msra.mxu0 0.0
  %529 = vmatprep.subr.mxu0 0.0
  %530 = vmatpush1.msra.mxu0 0.0
  %531 = vmatprep.mubr.f32.mxu0 0.0
  %532 = vmatmul.mubr.f32.gmra.mrb[0].mxu0 %v446
  %v533 = vpop.f32.mrb[0].mxu0
  %v534 = vadd.f32 %v442, %v533
  %v535 = vpop.f32.mrb[0].mxu0
  %v536 = vadd.f32 %v442, %v535
  %537 = vdwg.mxu0
  %538 = vmatprep.subr.mxu0 %v411
  %539 = vmatpush1.msra.mxu0 %v410
  %540 = vmatprep.subr.mxu0 %v417
  %541 = vmatpush1.msra.mxu0 %v416
  %542 = vmatprep.subr.mxu0 %v423
  %543 = vmatpush1.msra.mxu0 %v422
  %544 = vmatprep.subr.mxu0 %v429
  %545 = vmatpush1.msra.mxu0 %v428
  %546 = vmatprep.subr.mxu0 %v459
  %547 = vmatpush1.msra.mxu0 %v456
  %548 = vmatprep.subr.mxu0 0.0
  %549 = vmatpush1.msra.mxu0 0.0
  %550 = vmatprep.subr.mxu0 0.0
  %551 = vmatpush1.msra.mxu0 0.0
  %552 = vmatprep.subr.mxu0 0.0
  %553 = vmatpush1.msra.mxu0 0.0
  %554 = vmatprep.subr.mxu0 0.0
  %555 = vmatpush1.msra.mxu0 0.0
  %556 = vmatprep.subr.mxu0 0.0
  %557 = vmatpush1.msra.mxu0 0.0
  %558 = vmatprep.subr.mxu0 0.0
  %559 = vmatpush1.msra.mxu0 0.0
  %560 = vmatprep.subr.mxu0 0.0
  %561 = vmatpush1.msra.mxu0 0.0
  %562 = vmatprep.subr.mxu0 0.0
  %563 = vmatpush1.msra.mxu0 0.0
  %564 = vmatprep.subr.mxu0 0.0
  %565 = vmatpush1.msra.mxu0 0.0
  %566 = vmatprep.subr.mxu0 0.0
  %567 = vmatpush1.msra.mxu0 0.0
  %568 = vmatprep.subr.mxu0 0.0
  %569 = vmatpush1.msra.mxu0 0.0
  %570 = vmatprep.subr.mxu0 0.0
  %571 = vmatpush1.msra.mxu0 0.0
  %572 = vmatprep.subr.mxu0 0.0
  %573 = vmatpush1.msra.mxu0 0.0
  %574 = vmatprep.subr.mxu0 0.0
  %575 = vmatpush1.msra.mxu0 0.0
  %576 = vmatprep.subr.mxu0 0.0
  %577 = vmatpush1.msra.mxu0 0.0
  %578 = vmatprep.subr.mxu0 0.0
  %579 = vmatpush1.msra.mxu0 0.0
  %580 = vmatprep.subr.mxu0 0.0
  %581 = vmatpush1.msra.mxu0 0.0
  %582 = vmatprep.subr.mxu0 0.0
  %583 = vmatpush1.msra.mxu0 0.0
  %584 = vmatprep.subr.mxu0 0.0
  %585 = vmatpush1.msra.mxu0 0.0
  %586 = vmatprep.subr.mxu0 0.0
  %587 = vmatpush1.msra.mxu0 0.0
  %588 = vmatprep.subr.mxu0 0.0
  %589 = vmatpush1.msra.mxu0 0.0
  %590 = vmatprep.subr.mxu0 0.0
  %591 = vmatpush1.msra.mxu0 0.0
  %592 = vmatprep.subr.mxu0 0.0
  %593 = vmatpush1.msra.mxu0 0.0
  %594 = vmatprep.subr.mxu0 0.0
  %595 = vmatpush1.msra.mxu0 0.0
  %596 = vmatprep.subr.mxu0 0.0
  %597 = vmatpush1.msra.mxu0 0.0
  %598 = vmatprep.subr.mxu0 0.0
  %599 = vmatpush1.msra.mxu0 0.0
  %600 = vmatprep.subr.mxu0 0.0
  %601 = vmatpush1.msra.mxu0 0.0
  %602 = vmatprep.mubr.f32.mxu0 0.0
  %603 = vmatmul.mubr.f32.gmra.mrb[0].mxu0 %v446
  %v604 = vpop.f32.mrb[0].mxu0
  %v605 = vadd.f32 %v442, %v604
  %v606 = vpop.f32.mrb[0].mxu0
  %v607 = vadd.f32 %v442, %v606
  %608 = vdwg.mxu0
  %609 = vmatprep.subr.mxu0 %v413
  %610 = vmatpush1.msra.mxu0 %v412
  %611 = vmatprep.subr.mxu0 %v419
  %612 = vmatpush1.msra.mxu0 %v418
  %613 = vmatprep.subr.mxu0 %v425
  %614 = vmatpush1.msra.mxu0 %v424
  %615 = vmatprep.subr.mxu0 %v431
  %616 = vmatpush1.msra.mxu0 %v430
  %617 = vmatprep.subr.mxu0 %v465
  %618 = vmatpush1.msra.mxu0 %v462
  %619 = vmatprep.subr.mxu0 0.0
  %620 = vmatpush1.msra.mxu0 0.0
  %621 = vmatprep.subr.mxu0 0.0
  %622 = vmatpush1.msra.mxu0 0.0
  %623 = vmatprep.subr.mxu0 0.0
  %624 = vmatpush1.msra.mxu0 0.0
  %625 = vmatprep.subr.mxu0 0.0
  %626 = vmatpush1.msra.mxu0 0.0
  %627 = vmatprep.subr.mxu0 0.0
  %628 = vmatpush1.msra.mxu0 0.0
  %629 = vmatprep.subr.mxu0 0.0
  %630 = vmatpush1.msra.mxu0 0.0
  %631 = vmatprep.subr.mxu0 0.0
  %632 = vmatpush1.msra.mxu0 0.0
  %633 = vmatprep.subr.mxu0 0.0
  %634 = vmatpush1.msra.mxu0 0.0
  %635 = vmatprep.subr.mxu0 0.0
  %636 = vmatpush1.msra.mxu0 0.0
  %637 = vmatprep.subr.mxu0 0.0
  %638 = vmatpush1.msra.mxu0 0.0
  %639 = vmatprep.subr.mxu0 0.0
  %640 = vmatpush1.msra.mxu0 0.0
  %641 = vmatprep.subr.mxu0 0.0
  %642 = vmatpush1.msra.mxu0 0.0
  %643 = vmatprep.subr.mxu0 0.0
  %644 = vmatpush1.msra.mxu0 0.0
  %645 = vmatprep.subr.mxu0 0.0
  %646 = vmatpush1.msra.mxu0 0.0
  %647 = vmatprep.subr.mxu0 0.0
  %648 = vmatpush1.msra.mxu0 0.0
  %649 = vmatprep.subr.mxu0 0.0
  %650 = vmatpush1.msra.mxu0 0.0
  %651 = vmatprep.subr.mxu0 0.0
  %652 = vmatpush1.msra.mxu0 0.0
  %653 = vmatprep.subr.mxu0 0.0
  %654 = vmatpush1.msra.mxu0 0.0
  %655 = vmatprep.subr.mxu0 0.0
  %656 = vmatpush1.msra.mxu0 0.0
  %657 = vmatprep.subr.mxu0 0.0
  %658 = vmatpush1.msra.mxu0 0.0
  %659 = vmatprep.subr.mxu0 0.0
  %660 = vmatpush1.msra.mxu0 0.0
  %661 = vmatprep.subr.mxu0 0.0
  %662 = vmatpush1.msra.mxu0 0.0
  %663 = vmatprep.subr.mxu0 0.0
  %664 = vmatpush1.msra.mxu0 0.0
  %665 = vmatprep.subr.mxu0 0.0
  %666 = vmatpush1.msra.mxu0 0.0
  %667 = vmatprep.subr.mxu0 0.0
  %668 = vmatpush1.msra.mxu0 0.0
  %669 = vmatprep.subr.mxu0 0.0
  %670 = vmatpush1.msra.mxu0 0.0
  %671 = vmatprep.subr.mxu0 0.0
  %672 = vmatpush1.msra.mxu0 0.0
  %673 = vmatprep.mubr.f32.mxu0 0.0
  %674 = vmatmul.mubr.f32.gmra.mrb[0].mxu0 %v446
  %v675 = vpop.f32.mrb[0].mxu0
  %v676 = vadd.f32 %v442, %v675
  %v677 = vpop.f32.mrb[0].mxu0
  %v678 = vadd.f32 %v442, %v677
  %679 = vdwg.mxu0
  %680 = vst [vmem:[%s3] sm:$0xff] %v534
  %681 = vst [vmem:[%s3 + $0x8] sm:$0xff] %v536
  %682 = vst [vmem:[%s3 + $0x10] sm:$0xff] %v605
  %s683 = scalar_lea.vmem %s3, 24
  %684 = vst [vmem:[%s683] sm:$0xff] %v607
  %685 = vst [vmem:[%s683 + $0x8] sm:$0xff] %v676
  %686 = vst [vmem:[%s683 + $0x10] sm:$0xff] %v678
  // Predicated region
  $region14: #{reflection_pad_conv2d.1} parent=0 // pred_check
    _
  $region15: #{reflection_pad_conv2d.1} parent=0 // pred_check_branch
    %688 = sbr.rel (0) target = $region17
  $region16: #{reflection_pad_conv2d.1} parent=0 // pred_region
    _
  $region17: #{reflection_pad_conv2d.1} parent=0 // pred_fallthru
    _
  // Predicated region
  $region18: #{reflection_pad_conv2d.1} parent=0 // pred_check
    _
  $region19: #{reflection_pad_conv2d.1} parent=0 // pred_check_branch
    %690 = sbr.rel (0) target = $region21
  $region20: #{reflection_pad_conv2d.1} parent=0 // pred_region
    _
  $region21: #{reflection_pad_conv2d.1} parent=0 // pred_fallthru
    _

</llo_original>
